<compile_context>
chip_gen: v6e
topology: v6e:2x2x1
jax: 0.10.0
libtpu: 0.0.40
codegen_flags: <defaults>
</compile_context>

<pallas_src>
import functools

import jax
import jax.numpy as jnp
from jax.experimental import pallas as pl
from jax.experimental.pallas import tpu as pltpu


def _round_up(x, m):
    return ((x + m - 1) // m) * m


# ----------------------------------------------------------------------------
# Pallas kernel: one (TM, TK) @ (TK, TN) tile of the im2col matmul.
# Grid = (M tiles, Cout tiles, K tiles); reduction (K) axis is last.
#   x_ref: (TM, TK)   w_ref: (TK, TN)   bias_ref: (1, TN)
#   o_ref: (TM, TN)   acc_ref: VMEM (TM, TN) f32 (resident across K)
# ----------------------------------------------------------------------------
def conv_mm_kernel(x_ref, w_ref, bias_ref, o_ref, acc_ref):
    k = pl.program_id(2)

    @pl.when(k == 0)
    def _():
        acc_ref[...] = jnp.zeros_like(acc_ref)

    acc_ref[...] += jnp.dot(
        x_ref[...], w_ref[...], preferred_element_type=jnp.float32
    )

    @pl.when(k == pl.num_programs(2) - 1)
    def _():
        o_ref[...] = (acc_ref[...] + bias_ref[...].astype(jnp.float32)).astype(
            o_ref.dtype
        )


def _tiled_matmul_bias(x_cols, w_flat, bias, out_dtype, *, tm, tn, tk):
    """y = x_cols @ w_flat + bias, tiled for TPU.  Pads M/K/Cout to tiles."""
    M, K = x_cols.shape
    K2, O = w_flat.shape
    assert K == K2
    M_p = _round_up(M, tm)
    K_p = _round_up(K, tk)
    O_p = _round_up(O, tn)

    x_p = jnp.pad(x_cols, ((0, M_p - M), (0, K_p - K)))
    w_p = jnp.pad(w_flat, ((0, K_p - K), (0, O_p - O)))
    b_p = jnp.pad(bias.reshape(1, O), ((0, 0), (0, O_p - O)))

    grid = (M_p // tm, O_p // tn, K_p // tk)

    y_p = pl.pallas_call(
        conv_mm_kernel,
        out_shape=jax.ShapeDtypeStruct((M_p, O_p), out_dtype),
        grid=grid,
        in_specs=[
            pl.BlockSpec((tm, tk), lambda i, j, k: (i, k)),
            pl.BlockSpec((tk, tn), lambda i, j, k: (k, j)),
            pl.BlockSpec((1, tn), lambda i, j, k: (0, j)),
        ],
        out_specs=pl.BlockSpec((tm, tn), lambda i, j, k: (i, j)),
        scratch_shapes=[pltpu.VMEM((tm, tn), jnp.float32)],
        compiler_params=pltpu.CompilerParams(
            dimension_semantics=("parallel", "parallel", "arbitrary")
        ),
    )(x_p, w_p, b_p)
    return y_p[:M, :O]


def lora_conv2d_forward(
    x_nchw,
    base_weight,     # (O, I, kH, kW)
    base_bias,       # (O,) or None
    delta_a,         # rank_for="kernel": (O, I, kH, r); "channels": (kH, kW, O, r)
    delta_b,         # rank_for="kernel": (O, I, r, kW); "channels": (kH, kW, r, I)
    delta_bias,      # (O,) or None
    *,
    alpha,
    rank,
    beta,
    rank_for="kernel",
    stride=(1, 1),
    padding=(1, 1),
    dilation=(1, 1),
    adapter_enabled=True,
    tm=512,
    tn=256,
    tk=256,
):
    O, I, kH, kW = base_weight.shape
    N, Cin, H, W = x_nchw.shape
    assert Cin == I, "groups != 1 not supported"
    sh, sw = stride
    ph, pw = padding
    dh, dw = dilation

    # ---- effective weight / bias (tiny; plain JAX, constants baked in) ----
    if adapter_enabled:
        scale = float(alpha) / float(rank)
        if rank_for == "kernel":
            w_eff = base_weight + scale * jnp.einsum(
                "oihr,oirw->oihw", delta_a, delta_b
            )
        elif rank_for == "channels":
            w_eff = base_weight + scale * jnp.einsum(
                "hwor,hwri->oihw", delta_a, delta_b
            )
        else:
            raise ValueError(f"invalid rank_for: {rank_for}")
        if base_bias is not None and delta_bias is not None:
            b_eff = base_bias + float(beta) * delta_bias
        elif base_bias is not None:
            b_eff = base_bias
        elif delta_bias is not None:
            b_eff = float(beta) * delta_bias
        else:
            b_eff = jnp.zeros((O,), x_nchw.dtype)
    else:
        w_eff = base_weight
        b_eff = base_bias if base_bias is not None else jnp.zeros((O,), x_nchw.dtype)

    # ---- im2col: fold the kH*kW taps into the contraction dim ----
    Ho = (H + 2 * ph - dh * (kH - 1) - 1) // sh + 1
    Wo = (W + 2 * pw - dw * (kW - 1) - 1) // sw + 1
    M = N * Ho * Wo

    x_nhwc = jnp.transpose(x_nchw, (0, 2, 3, 1))                  # channels -> lanes
    xp = jnp.pad(x_nhwc, ((0, 0), (ph, ph), (pw, pw), (0, 0)))

    cols = []
    for kh in range(kH):
        for kw in range(kW):
            sl = xp[
                :,
                kh * dh : kh * dh + (Ho - 1) * sh + 1 : sh,
                kw * dw : kw * dw + (Wo - 1) * sw + 1 : sw,
                :,
            ]
            cols.append(sl.reshape(M, Cin))
    # K ordering is (kh, kw, cin) — must match the weight layout below.
    x_cols = jnp.concatenate(cols, axis=-1)                       # (M, kH*kW*Cin)

    # Weight OIHW -> (kH, kW, Cin, Cout) -> (K, Cout); Cout on the lane dim.
    w_flat = jnp.transpose(w_eff, (2, 3, 1, 0)).reshape(kH * kW * Cin, O)

    # Clamp tile sizes for small problems (still multiples of 8 / 128).
    K = kH * kW * Cin
    tm_eff = min(tm, _round_up(M, 8))
    tk_eff = min(tk, _round_up(K, 128))
    tn_eff = min(tn, _round_up(O, 128))

    y_flat = _tiled_matmul_bias(
        x_cols, w_flat, b_eff, x_nchw.dtype, tm=tm_eff, tn=tn_eff, tk=tk_eff
    )
    y_nhwc = y_flat.reshape(N, Ho, Wo, O)
    return jnp.transpose(y_nhwc, (0, 3, 1, 2))                    # back to NCHW


# ----------------------------------------------------------------------------
# Demo / correctness check
# ----------------------------------------------------------------------------
def _ref_forward(x, w_eff, b_eff, stride, padding, dilation):
    y = jax.lax.conv_general_dilated(
        x,
        w_eff,
        window_strides=stride,
        padding=[(padding[0], padding[0]), (padding[1], padding[1])],
        rhs_dilation=dilation,
        dimension_numbers=("NCHW", "OIHW", "NCHW"),
    )
    return y + b_eff[None, :, None, None]


if __name__ == "__main__":
    key = jax.random.PRNGKey(0)
    k_x, k_w, k_b, k_a, k_bB, k_db, k_x2 = jax.random.split(key, 7)

    # --- check 1: small config (rank_for="kernel"), default tiles ---
    N, Cin, H, W = 2, 4, 16, 16
    Cout, kH, kW = 8, 3, 3
    rank, alpha, beta = 2, 4.0, 0.5
    stride, padding, dilation = (1, 1), (1, 1), (1, 1)

    x = jax.random.normal(k_x, (N, Cin, H, W), dtype=jnp.float32)
    base_weight = jax.random.normal(k_w, (Cout, Cin, kH, kW), dtype=jnp.float32) * 0.1
    base_bias = jax.random.normal(k_b, (Cout,), dtype=jnp.float32) * 0.1
    bound_a = (6.0 / ((1.0 + 5.0) * Cin * kH * rank)) ** 0.5
    bound_b = (6.0 / ((1.0 + 5.0) * Cin * rank * kW)) ** 0.5
    delta_a = jax.random.uniform(
        k_a, (Cout, Cin, kH, rank), minval=-bound_a, maxval=bound_a, dtype=jnp.float32
    )
    delta_b = jax.random.uniform(
        k_bB, (Cout, Cin, rank, kW), minval=-bound_b, maxval=bound_b, dtype=jnp.float32
    )
    delta_bias = jax.random.normal(k_db, (Cout,), dtype=jnp.float32) * 0.1

    fwd = jax.jit(
        functools.partial(
            lora_conv2d_forward,
            alpha=alpha,
            rank=rank,
            beta=beta,
            rank_for="kernel",
            stride=stride,
            padding=padding,
            dilation=dilation,
            adapter_enabled=True,
        )
    )
    y = fwd(x, base_weight, base_bias, delta_a, delta_b, delta_bias)
    jax.block_until_ready(y)

    w_eff_ref = base_weight + (alpha / rank) * jnp.einsum(
        "oihr,oirw->oihw", delta_a, delta_b
    )
    b_eff_ref = base_bias + beta * delta_bias
    y_ref = _ref_forward(x, w_eff_ref, b_eff_ref, stride, padding, dilation)
    assert y.shape == y_ref.shape == (N, Cout, H, W)
    assert jnp.allclose(y, y_ref, atol=1e-4, rtol=1e-4), (
        float(jnp.max(jnp.abs(y - y_ref)))
    )

    # --- check 2: exercise multi-tile M and multi-step K reduction ---
    Cin2 = 16  # K = 9*16 = 144 -> two K steps with tk=128
    x2 = jax.random.normal(k_x2, (N, Cin2, H, W), dtype=jnp.float32)
    bw2 = jax.random.normal(k_w, (Cout, Cin2, kH, kW), dtype=jnp.float32) * 0.1
    da2 = jax.random.uniform(
        k_a, (Cout, Cin2, kH, rank), minval=-bound_a, maxval=bound_a, dtype=jnp.float32
    )
    db2 = jax.random.uniform(
        k_bB, (Cout, Cin2, rank, kW), minval=-bound_b, maxval=bound_b, dtype=jnp.float32
    )
    fwd2 = jax.jit(
        functools.partial(
            lora_conv2d_forward,
            alpha=alpha,
            rank=rank,
            beta=beta,
            rank_for="kernel",
            stride=stride,
            padding=padding,
            dilation=dilation,
            adapter_enabled=True,
            tm=128,
            tn=128,
            tk=128,
        )
    )
    y2 = fwd2(x2, bw2, base_bias, da2, db2, delta_bias)
    jax.block_until_ready(y2)
    w_eff2 = bw2 + (alpha / rank) * jnp.einsum("oihr,oirw->oihw", da2, db2)
    y2_ref = _ref_forward(x2, w_eff2, b_eff_ref, stride, padding, dilation)
    assert jnp.allclose(y2, y2_ref, atol=1e-4, rtol=1e-4), (
        float(jnp.max(jnp.abs(y2 - y2_ref)))
    )

    print("KERNEL_OK")
</pallas_src>

<mosaic_0001>
module attributes {stable_mosaic.version = 11 : i64} {
  func.func @conv_mm_kernel(%arg0: i32, %arg1: i32, %arg2: i32, %arg3: memref<512x128xf32, #tpu.memory_space<vmem>>, %arg4: memref<128x128xf32, #tpu.memory_space<vmem>>, %arg5: memref<1x128xf32, #tpu.memory_space<vmem>>, %arg6: memref<512x128xf32, #tpu.memory_space<vmem>>, %arg7: memref<512x128xf32, #tpu.memory_space<vmem>>) attributes {dimension_semantics = [#tpu.dimension_semantics<parallel>, #tpu.dimension_semantics<parallel>, #tpu.dimension_semantics<arbitrary>], iteration_bounds = array<i64: 1, 1, 1>, scalar_prefetch = 0 : i64, scratch_operands = 1 : i64, tpu.core_type = #tpu.core_type<tc>, window_params = [{transform_indices = @transform_0, window_bounds = array<i64: 512, 128>}, {transform_indices = @transform_1, window_bounds = array<i64: 128, 128>}, {transform_indices = @transform_2, window_bounds = array<i64: 1, 128>}, {transform_indices = @transform_3, window_bounds = array<i64: 512, 128>}]} {
    %c0_i32 = arith.constant 0 : i32
    %0 = arith.cmpi eq, %arg2, %c0_i32 : i32
    %1 = arith.extui %0 : i1 to i32
    %c0_i32_0 = arith.constant 0 : i32
    %2 = arith.cmpi ne, %1, %c0_i32_0 : i32
    scf.if %2 {
      %cst_10 = arith.constant 0.000000e+00 : f32
      %12 = vector.broadcast %cst_10 : f32 to vector<512x128xf32>
      %c0_11 = arith.constant 0 : index
      %c0_12 = arith.constant 0 : index
      %13 = vector.load %arg7[%c0_11, %c0_12] : memref<512x128xf32, #tpu.memory_space<vmem>>, vector<512x128xf32>
      tpu.vector_store %arg7[%c0_11, %c0_12], %12 {strides = array<i32>} : memref<512x128xf32, #tpu.memory_space<vmem>>, vector<512x128xf32>,
    } else {
    }
    %c0 = arith.constant 0 : index
    %c0_1 = arith.constant 0 : index
    %3 = vector.load %arg7[%c0, %c0_1] : memref<512x128xf32, #tpu.memory_space<vmem>>, vector<512x128xf32>
    %c0_2 = arith.constant 0 : index
    %c0_3 = arith.constant 0 : index
    %4 = vector.load %arg3[%c0_2, %c0_3] : memref<512x128xf32, #tpu.memory_space<vmem>>, vector<512x128xf32>
    %c0_4 = arith.constant 0 : index
    %c0_5 = arith.constant 0 : index
    %5 = vector.load %arg4[%c0_4, %c0_5] : memref<128x128xf32, #tpu.memory_space<vmem>>, vector<128x128xf32>
    %cst = arith.constant dense<0.000000e+00> : vector<512x128xf32>
    %6 = tpu.matmul %4, %5, %cst {dimension_numbers = #tpu.dot_dimension_numbers<[1], [0], [0], [1], [0, 0, 1, 1], [], []>} : vector<512x128xf32>, vector<128x128xf32>, vector<512x128xf32> -> vector<512x128xf32>
    %7 = arith.addf %3, %6 : vector<512x128xf32>
    %c0_6 = arith.constant 0 : index
    %c0_7 = arith.constant 0 : index
    %8 = vector.load %arg7[%c0_6, %c0_7] : memref<512x128xf32, #tpu.memory_space<vmem>>, vector<512x128xf32>
    tpu.vector_store %arg7[%c0_6, %c0_7], %7 {strides = array<i32>} : memref<512x128xf32, #tpu.memory_space<vmem>>, vector<512x128xf32>,
    %c0_i32_8 = arith.constant 0 : i32
    %9 = arith.cmpi eq, %arg2, %c0_i32_8 : i32
    %10 = arith.extui %9 : i1 to i32
    %c0_i32_9 = arith.constant 0 : i32
    %11 = arith.cmpi ne, %10, %c0_i32_9 : i32
    scf.if %11 {
      %c0_10 = arith.constant 0 : index
      %c0_11 = arith.constant 0 : index
      %12 = vector.load %arg7[%c0_10, %c0_11] : memref<512x128xf32, #tpu.memory_space<vmem>>, vector<512x128xf32>
      %c0_12 = arith.constant 0 : index
      %c0_13 = arith.constant 0 : index
      %13 = vector.load %arg5[%c0_12, %c0_13] : memref<1x128xf32, #tpu.memory_space<vmem>>, vector<1x128xf32>
      %14 = vector.broadcast %13 : vector<1x128xf32> to vector<512x128xf32>
      %15 = arith.addf %12, %14 : vector<512x128xf32>
      %c0_14 = arith.constant 0 : index
      %c0_15 = arith.constant 0 : index
      %16 = vector.load %arg6[%c0_14, %c0_15] : memref<512x128xf32, #tpu.memory_space<vmem>>, vector<512x128xf32>
      tpu.vector_store %arg6[%c0_14, %c0_15], %15 {strides = array<i32>} : memref<512x128xf32, #tpu.memory_space<vmem>>, vector<512x128xf32>,
    } else {
    }
    return
  }
  func.func @transform_0(%arg0: i32, %arg1: i32, %arg2: i32) -> (i32, i32) {
    %c0_i32 = arith.constant 0 : i32
    return %arg0, %arg2 : i32, i32
  }
  func.func @transform_1(%arg0: i32, %arg1: i32, %arg2: i32) -> (i32, i32) {
    %c0_i32 = arith.constant 0 : i32
    return %arg2, %arg1 : i32, i32
  }
  func.func @transform_2(%arg0: i32, %arg1: i32, %arg2: i32) -> (i32, i32) {
    %c0_i32 = arith.constant 0 : i32
    %c0_i32_0 = arith.constant 0 : i32
    return %c0_i32, %arg1 : i32, i32
  }
  func.func @transform_3(%arg0: i32, %arg1: i32, %arg2: i32) -> (i32, i32) {
    %c0_i32 = arith.constant 0 : i32
    return %arg0, %arg1 : i32, i32
  }
}

</mosaic_0001>

<llo_original>
// kernel: lora_conv2d_forward.1
$region0: #{lora_conv2d_forward.1}
  #allocation0 [shape = 'u32[]', space=smem, size = 0x4, offset = 0x4, fixed_abs, tag = 'smem constant byte address 0x4 - core index']
  #allocation1 [shape = 'u32[144,128]{1,0:T(1,128)}', space=vmem, size = 0x12000, scoped, tag = 'internal scratch']
  #allocation2 [shape = 'f32[512,128]{1,0:T(8,128)}', space=vmem, size = 0x40000, scoped, tag = 'scratch operand']
  %s0 = inlined_call_operand.vmem [shape: f32[512,128], index: 0, kind: input, shape index: {}]
  %s1 = inlined_call_operand.vmem [shape: f32[128,128], index: 1, kind: input, shape index: {}]
  %s2 = inlined_call_operand.vmem [shape: f32[1,128], index: 2, kind: input, shape index: {}]
  %s3 = inlined_call_operand.vmem [shape: f32[512,128], index: 3, kind: output, shape index: {}]
  %s4 = sld [smem:[#allocation0]]
  $region30: #{lora_conv2d_forward.1} parent=0
    _
  %s6 = ssub.s32 1, %s4
  %s7 = scalar_select 0, %s6, %s4
  // Predicated region
  $region2: #{lora_conv2d_forward.1} parent=0 // pred_check
    _
  $region3: #{lora_conv2d_forward.1} parent=0 // pred_check_branch
    %9 = sbr.rel (0) target = $region5
  $region4: #{lora_conv2d_forward.1} parent=0 // pred_region
    _
  $region5: #{lora_conv2d_forward.1} parent=0 // pred_fallthru
    _
  // Predicated region
  $region6: #{lora_conv2d_forward.1} parent=0 // pred_check
    _
  $region7: #{lora_conv2d_forward.1} parent=0 // pred_check_branch
    %11 = sbr.rel (0) target = $region9
  $region8: #{lora_conv2d_forward.1} parent=0 // pred_region
    _
  $region9: #{lora_conv2d_forward.1} parent=0 // pred_fallthru
    _
  // Predicated region
  $region10: #{lora_conv2d_forward.1} parent=0 // pred_check
    _
  $region11: #{lora_conv2d_forward.1} parent=0 // pred_check_branch
    %13 = sbr.rel (0) target = $region13
  $region12: #{lora_conv2d_forward.1} parent=0 // pred_region
    _
  $region13: #{lora_conv2d_forward.1} parent=0 // pred_fallthru
    _
  %p14 = scmp.eq.s32.totalorder 0, 0
  // Predicated region
  $region14: #{lora_conv2d_forward.1} parent=0 // pred_check
    %p15 = pneg %p14
  $region15: #{lora_conv2d_forward.1} parent=0 // pred_check_branch
    %17 = sbr.rel (%p15) target = $region17
  $region16: #{lora_conv2d_forward.1} parent=0 // pred_region
    %18 = vst [vmem:[#allocation2] sm:$0xff] 0.0
    %19 = vst [vmem:[#allocation2 + $0x8] sm:$0xff] 0.0
    %20 = vst [vmem:[#allocation2 + $0x10] sm:$0xff] 0.0
    %21 = vst [vmem:[#allocation2 + $0x18] sm:$0xff] 0.0
    %22 = vst [vmem:[#allocation2 + $0x20] sm:$0xff] 0.0
    %23 = vst [vmem:[#allocation2 + $0x28] sm:$0xff] 0.0
    %24 = vst [vmem:[#allocation2 + $0x30] sm:$0xff] 0.0
    %25 = vst [vmem:[#allocation2 + $0x38] sm:$0xff] 0.0
    %26 = vst [vmem:[#allocation2 + $0x40] sm:$0xff] 0.0
    %27 = vst [vmem:[#allocation2 + $0x48] sm:$0xff] 0.0
    %28 = vst [vmem:[#allocation2 + $0x50] sm:$0xff] 0.0
    %29 = vst [vmem:[#allocation2 + $0x58] sm:$0xff] 0.0
    %30 = vst [vmem:[#allocation2 + $0x60] sm:$0xff] 0.0
    %31 = vst [vmem:[#allocation2 + $0x68] sm:$0xff] 0.0
    %32 = vst [vmem:[#allocation2 + $0x70] sm:$0xff] 0.0
    %33 = vst [vmem:[#allocation2 + $0x78] sm:$0xff] 0.0
    %34 = vst [vmem:[#allocation2 + $0x80] sm:$0xff] 0.0
    %35 = vst [vmem:[#allocation2 + $0x88] sm:$0xff] 0.0
    %36 = vst [vmem:[#allocation2 + $0x90] sm:$0xff] 0.0
    %37 = vst [vmem:[#allocation2 + $0x98] sm:$0xff] 0.0
    %38 = vst [vmem:[#allocation2 + $0xa0] sm:$0xff] 0.0
    %39 = vst [vmem:[#allocation2 + $0xa8] sm:$0xff] 0.0
    %40 = vst [vmem:[#allocation2 + $0xb0] sm:$0xff] 0.0
    %41 = vst [vmem:[#allocation2 + $0xb8] sm:$0xff] 0.0
    %42 = vst [vmem:[#allocation2 + $0xc0] sm:$0xff] 0.0
    %43 = vst [vmem:[#allocation2 + $0xc8] sm:$0xff] 0.0
    %44 = vst [vmem:[#allocation2 + $0xd0] sm:$0xff] 0.0
    %45 = vst [vmem:[#allocation2 + $0xd8] sm:$0xff] 0.0
    %46 = vst [vmem:[#allocation2 + $0xe0] sm:$0xff] 0.0
    %47 = vst [vmem:[#allocation2 + $0xe8] sm:$0xff] 0.0
    %48 = vst [vmem:[#allocation2 + $0xf0] sm:$0xff] 0.0
    %49 = vst [vmem:[#allocation2 + $0xf8] sm:$0xff] 0.0
    %50 = vst [vmem:[#allocation2 + $0x100] sm:$0xff] 0.0
    %51 = vst [vmem:[#allocation2 + $0x108] sm:$0xff] 0.0
    %52 = vst [vmem:[#allocation2 + $0x110] sm:$0xff] 0.0
    %53 = vst [vmem:[#allocation2 + $0x118] sm:$0xff] 0.0
    %54 = vst [vmem:[#allocation2 + $0x120] sm:$0xff] 0.0
    %55 = vst [vmem:[#allocation2 + $0x128] sm:$0xff] 0.0
    %56 = vst [vmem:[#allocation2 + $0x130] sm:$0xff] 0.0
    %57 = vst [vmem:[#allocation2 + $0x138] sm:$0xff] 0.0
    %58 = vst [vmem:[#allocation2 + $0x140] sm:$0xff] 0.0
    %59 = vst [vmem:[#allocation2 + $0x148] sm:$0xff] 0.0
    %60 = vst [vmem:[#allocation2 + $0x150] sm:$0xff] 0.0
    %61 = vst [vmem:[#allocation2 + $0x158] sm:$0xff] 0.0
    %62 = vst [vmem:[#allocation2 + $0x160] sm:$0xff] 0.0
    %63 = vst [vmem:[#allocation2 + $0x168] sm:$0xff] 0.0
    %64 = vst [vmem:[#allocation2 + $0x170] sm:$0xff] 0.0
    %65 = vst [vmem:[#allocation2 + $0x178] sm:$0xff] 0.0
    %66 = vst [vmem:[#allocation2 + $0x180] sm:$0xff] 0.0
    %67 = vst [vmem:[#allocation2 + $0x188] sm:$0xff] 0.0
    %68 = vst [vmem:[#allocation2 + $0x190] sm:$0xff] 0.0
    %69 = vst [vmem:[#allocation2 + $0x198] sm:$0xff] 0.0
    %70 = vst [vmem:[#allocation2 + $0x1a0] sm:$0xff] 0.0
    %71 = vst [vmem:[#allocation2 + $0x1a8] sm:$0xff] 0.0
    %72 = vst [vmem:[#allocation2 + $0x1b0] sm:$0xff] 0.0
    %73 = vst [vmem:[#allocation2 + $0x1b8] sm:$0xff] 0.0
    %74 = vst [vmem:[#allocation2 + $0x1c0] sm:$0xff] 0.0
    %75 = vst [vmem:[#allocation2 + $0x1c8] sm:$0xff] 0.0
    %76 = vst [vmem:[#allocation2 + $0x1d0] sm:$0xff] 0.0
    %77 = vst [vmem:[#allocation2 + $0x1d8] sm:$0xff] 0.0
    %78 = vst [vmem:[#allocation2 + $0x1e0] sm:$0xff] 0.0
    %79 = vst [vmem:[#allocation2 + $0x1e8] sm:$0xff] 0.0
    %80 = vst [vmem:[#allocation2 + $0x1f0] sm:$0xff] 0.0
    %81 = vst [vmem:[#allocation2 + $0x1f8] sm:$0xff] 0.0
  $region17: #{lora_conv2d_forward.1} parent=0 // pred_fallthru
    _
  %v82 = vld [vmem:[#allocation2] sm:$0xff]
  %v83 = vld [vmem:[#allocation2 + $0x8] sm:$0xff]
  %v84 = vld [vmem:[#allocation2 + $0x10] sm:$0xff]
  %v85 = vld [vmem:[#allocation2 + $0x18] sm:$0xff]
  %v86 = vld [vmem:[#allocation2 + $0x20] sm:$0xff]
  %v87 = vld [vmem:[#allocation2 + $0x28] sm:$0xff]
  %v88 = vld [vmem:[#allocation2 + $0x30] sm:$0xff]
  %v89 = vld [vmem:[#allocation2 + $0x38] sm:$0xff]
  %v90 = vld [vmem:[#allocation2 + $0x40] sm:$0xff]
  %v91 = vld [vmem:[#allocation2 + $0x48] sm:$0xff]
  %v92 = vld [vmem:[#allocation2 + $0x50] sm:$0xff]
  %v93 = vld [vmem:[#allocation2 + $0x58] sm:$0xff]
  %v94 = vld [vmem:[#allocation2 + $0x60] sm:$0xff]
  %v95 = vld [vmem:[#allocation2 + $0x68] sm:$0xff]
  %v96 = vld [vmem:[#allocation2 + $0x70] sm:$0xff]
  %v97 = vld [vmem:[#allocation2 + $0x78] sm:$0xff]
  %v98 = vld [vmem:[#allocation2 + $0x80] sm:$0xff]
  %v99 = vld [vmem:[#allocation2 + $0x88] sm:$0xff]
  %v100 = vld [vmem:[#allocation2 + $0x90] sm:$0xff]
  %v101 = vld [vmem:[#allocation2 + $0x98] sm:$0xff]
  %v102 = vld [vmem:[#allocation2 + $0xa0] sm:$0xff]
  %v103 = vld [vmem:[#allocation2 + $0xa8] sm:$0xff]
  %v104 = vld [vmem:[#allocation2 + $0xb0] sm:$0xff]
  %v105 = vld [vmem:[#allocation2 + $0xb8] sm:$0xff]
  %v106 = vld [vmem:[#allocation2 + $0xc0] sm:$0xff]
  %v107 = vld [vmem:[#allocation2 + $0xc8] sm:$0xff]
  %v108 = vld [vmem:[#allocation2 + $0xd0] sm:$0xff]
  %v109 = vld [vmem:[#allocation2 + $0xd8] sm:$0xff]
  %v110 = vld [vmem:[#allocation2 + $0xe0] sm:$0xff]
  %v111 = vld [vmem:[#allocation2 + $0xe8] sm:$0xff]
  %v112 = vld [vmem:[#allocation2 + $0xf0] sm:$0xff]
  %v113 = vld [vmem:[#allocation2 + $0xf8] sm:$0xff]
  %v114 = vld [vmem:[#allocation2 + $0x100] sm:$0xff]
  %v115 = vld [vmem:[#allocation2 + $0x108] sm:$0xff]
  %v116 = vld [vmem:[#allocation2 + $0x110] sm:$0xff]
  %v117 = vld [vmem:[#allocation2 + $0x118] sm:$0xff]
  %v118 = vld [vmem:[#allocation2 + $0x120] sm:$0xff]
  %v119 = vld [vmem:[#allocation2 + $0x128] sm:$0xff]
  %v120 = vld [vmem:[#allocation2 + $0x130] sm:$0xff]
  %v121 = vld [vmem:[#allocation2 + $0x138] sm:$0xff]
  %v122 = vld [vmem:[#allocation2 + $0x140] sm:$0xff]
  %v123 = vld [vmem:[#allocation2 + $0x148] sm:$0xff]
  %v124 = vld [vmem:[#allocation2 + $0x150] sm:$0xff]
  %v125 = vld [vmem:[#allocation2 + $0x158] sm:$0xff]
  %v126 = vld [vmem:[#allocation2 + $0x160] sm:$0xff]
  %v127 = vld [vmem:[#allocation2 + $0x168] sm:$0xff]
  %v128 = vld [vmem:[#allocation2 + $0x170] sm:$0xff]
  %v129 = vld [vmem:[#allocation2 + $0x178] sm:$0xff]
  %v130 = vld [vmem:[#allocation2 + $0x180] sm:$0xff]
  %v131 = vld [vmem:[#allocation2 + $0x188] sm:$0xff]
  %v132 = vld [vmem:[#allocation2 + $0x190] sm:$0xff]
  %v133 = vld [vmem:[#allocation2 + $0x198] sm:$0xff]
  %v134 = vld [vmem:[#allocation2 + $0x1a0] sm:$0xff]
  %v135 = vld [vmem:[#allocation2 + $0x1a8] sm:$0xff]
  %v136 = vld [vmem:[#allocation2 + $0x1b0] sm:$0xff]
  %v137 = vld [vmem:[#allocation2 + $0x1b8] sm:$0xff]
  %v138 = vld [vmem:[#allocation2 + $0x1c0] sm:$0xff]
  %v139 = vld [vmem:[#allocation2 + $0x1c8] sm:$0xff]
  %v140 = vld [vmem:[#allocation2 + $0x1d0] sm:$0xff]
  %v141 = vld [vmem:[#allocation2 + $0x1d8] sm:$0xff]
  %v142 = vld [vmem:[#allocation2 + $0x1e0] sm:$0xff]
  %v143 = vld [vmem:[#allocation2 + $0x1e8] sm:$0xff]
  %v144 = vld [vmem:[#allocation2 + $0x1f0] sm:$0xff]
  %v145 = vld [vmem:[#allocation2 + $0x1f8] sm:$0xff]
  %v146 = vld [vmem:[%s0] sm:$0xff]
  %v147 = vld [vmem:[%s0 + $0x8] sm:$0xff]
  %v148 = vld [vmem:[%s0 + $0x10] sm:$0xff]
  %v149 = vld [vmem:[%s0 + $0x18] sm:$0xff]
  %v150 = vld [vmem:[%s0 + $0x20] sm:$0xff]
  %v151 = vld [vmem:[%s0 + $0x28] sm:$0xff]
  %v152 = vld [vmem:[%s0 + $0x30] sm:$0xff]
  %v153 = vld [vmem:[%s0 + $0x38] sm:$0xff]
  %v154 = vld [vmem:[%s0 + $0x40] sm:$0xff]
  %v155 = vld [vmem:[%s0 + $0x48] sm:$0xff]
  %v156 = vld [vmem:[%s0 + $0x50] sm:$0xff]
  %v157 = vld [vmem:[%s0 + $0x58] sm:$0xff]
  %v158 = vld [vmem:[%s0 + $0x60] sm:$0xff]
  %v159 = vld [vmem:[%s0 + $0x68] sm:$0xff]
  %v160 = vld [vmem:[%s0 + $0x70] sm:$0xff]
  %v161 = vld [vmem:[%s0 + $0x78] sm:$0xff]
  %v162 = vld [vmem:[%s0 + $0x80] sm:$0xff]
  %v163 = vld [vmem:[%s0 + $0x88] sm:$0xff]
  %v164 = vld [vmem:[%s0 + $0x90] sm:$0xff]
  %v165 = vld [vmem:[%s0 + $0x98] sm:$0xff]
  %v166 = vld [vmem:[%s0 + $0xa0] sm:$0xff]
  %v167 = vld [vmem:[%s0 + $0xa8] sm:$0xff]
  %v168 = vld [vmem:[%s0 + $0xb0] sm:$0xff]
  %v169 = vld [vmem:[%s0 + $0xb8] sm:$0xff]
  %v170 = vld [vmem:[%s0 + $0xc0] sm:$0xff]
  %v171 = vld [vmem:[%s0 + $0xc8] sm:$0xff]
  %v172 = vld [vmem:[%s0 + $0xd0] sm:$0xff]
  %v173 = vld [vmem:[%s0 + $0xd8] sm:$0xff]
  %v174 = vld [vmem:[%s0 + $0xe0] sm:$0xff]
  %v175 = vld [vmem:[%s0 + $0xe8] sm:$0xff]
  %v176 = vld [vmem:[%s0 + $0xf0] sm:$0xff]
  %v177 = vld [vmem:[%s0 + $0xf8] sm:$0xff]
  %v178 = vld [vmem:[%s0 + $0x100] sm:$0xff]
  %v179 = vld [vmem:[%s0 + $0x108] sm:$0xff]
  %v180 = vld [vmem:[%s0 + $0x110] sm:$0xff]
  %v181 = vld [vmem:[%s0 + $0x118] sm:$0xff]
  %v182 = vld [vmem:[%s0 + $0x120] sm:$0xff]
  %v183 = vld [vmem:[%s0 + $0x128] sm:$0xff]
  %v184 = vld [vmem:[%s0 + $0x130] sm:$0xff]
  %v185 = vld [vmem:[%s0 + $0x138] sm:$0xff]
  %v186 = vld [vmem:[%s0 + $0x140] sm:$0xff]
  %v187 = vld [vmem:[%s0 + $0x148] sm:$0xff]
  %v188 = vld [vmem:[%s0 + $0x150] sm:$0xff]
  %v189 = vld [vmem:[%s0 + $0x158] sm:$0xff]
  %v190 = vld [vmem:[%s0 + $0x160] sm:$0xff]
  %v191 = vld [vmem:[%s0 + $0x168] sm:$0xff]
  %v192 = vld [vmem:[%s0 + $0x170] sm:$0xff]
  %v193 = vld [vmem:[%s0 + $0x178] sm:$0xff]
  %v194 = vld [vmem:[%s0 + $0x180] sm:$0xff]
  %v195 = vld [vmem:[%s0 + $0x188] sm:$0xff]
  %v196 = vld [vmem:[%s0 + $0x190] sm:$0xff]
  %v197 = vld [vmem:[%s0 + $0x198] sm:$0xff]
  %v198 = vld [vmem:[%s0 + $0x1a0] sm:$0xff]
  %v199 = vld [vmem:[%s0 + $0x1a8] sm:$0xff]
  %v200 = vld [vmem:[%s0 + $0x1b0] sm:$0xff]
  %v201 = vld [vmem:[%s0 + $0x1b8] sm:$0xff]
  %v202 = vld [vmem:[%s0 + $0x1c0] sm:$0xff]
  %v203 = vld [vmem:[%s0 + $0x1c8] sm:$0xff]
  %v204 = vld [vmem:[%s0 + $0x1d0] sm:$0xff]
  %v205 = vld [vmem:[%s0 + $0x1d8] sm:$0xff]
  %v206 = vld [vmem:[%s0 + $0x1e0] sm:$0xff]
  %v207 = vld [vmem:[%s0 + $0x1e8] sm:$0xff]
  %v208 = vld [vmem:[%s0 + $0x1f0] sm:$0xff]
  %v209 = vld [vmem:[%s0 + $0x1f8] sm:$0xff]
  %v210 = vld [vmem:[%s1] sm:$0xff]
  %v211 = vld [vmem:[%s1 + $0x8] sm:$0xff]
  %v212 = vld [vmem:[%s1 + $0x10] sm:$0xff]
  %v213 = vld [vmem:[%s1 + $0x18] sm:$0xff]
  %v214 = vld [vmem:[%s1 + $0x20] sm:$0xff]
  %v215 = vld [vmem:[%s1 + $0x28] sm:$0xff]
  %v216 = vld [vmem:[%s1 + $0x30] sm:$0xff]
  %v217 = vld [vmem:[%s1 + $0x38] sm:$0xff]
  %v218 = vld [vmem:[%s1 + $0x40] sm:$0xff]
  %v219 = vld [vmem:[%s1 + $0x48] sm:$0xff]
  %v220 = vld [vmem:[%s1 + $0x50] sm:$0xff]
  %v221 = vld [vmem:[%s1 + $0x58] sm:$0xff]
  %v222 = vld [vmem:[%s1 + $0x60] sm:$0xff]
  %v223 = vld [vmem:[%s1 + $0x68] sm:$0xff]
  %v224 = vld [vmem:[%s1 + $0x70] sm:$0xff]
  %v225 = vld [vmem:[%s1 + $0x78] sm:$0xff]
  %226 = vmatprep.subr.mxu0 0.0
  %227 = vmatpush1.msra.mxu0 %v225
  %228 = vmatprep.subr.mxu0 0.0
  %229 = vmatpush1.msra.mxu0 %v224
  %230 = vmatprep.subr.mxu0 0.0
  %231 = vmatpush1.msra.mxu0 %v223
  %232 = vmatprep.subr.mxu0 0.0
  %233 = vmatpush1.msra.mxu0 %v222
  %234 = vmatprep.subr.mxu0 0.0
  %235 = vmatpush1.msra.mxu0 %v221
  %236 = vmatprep.subr.mxu0 0.0
  %237 = vmatpush1.msra.mxu0 %v220
  %238 = vmatprep.subr.mxu0 0.0
  %239 = vmatpush1.msra.mxu0 %v219
  %240 = vmatprep.subr.mxu0 0.0
  %241 = vmatpush1.msra.mxu0 %v218
  %242 = vmatprep.subr.mxu0 0.0
  %243 = vmatpush1.msra.mxu0 %v217
  %244 = vmatprep.subr.mxu0 0.0
  %245 = vmatpush1.msra.mxu0 %v216
  %246 = vmatprep.subr.mxu0 0.0
  %247 = vmatpush1.msra.mxu0 %v215
  %248 = vmatprep.subr.mxu0 0.0
  %249 = vmatpush1.msra.mxu0 %v214
  %250 = vmatprep.subr.mxu0 0.0
  %251 = vmatpush1.msra.mxu0 %v213
  %252 = vmatprep.subr.mxu0 0.0
  %253 = vmatpush1.msra.mxu0 %v212
  %254 = vmatprep.subr.mxu0 0.0
  %255 = vmatpush1.msra.mxu0 %v211
  %256 = vmatprep.subr.mxu0 0.0
  %257 = vmatpush1.msra.mxu0 %v210
  %258 = vmatprep.subr.mxu0 0.0
  %259 = vmatpush2.msra.mxu0 0.0
  %260 = vmatprep.subr.mxu0 0.0
  %261 = vmatpush2.msra.mxu0 0.0
  %262 = vmatprep.subr.mxu0 0.0
  %263 = vmatpush2.msra.mxu0 0.0
  %264 = vmatprep.subr.mxu0 0.0
  %265 = vmatpush2.msra.mxu0 0.0
  %266 = vmatprep.subr.mxu0 0.0
  %267 = vmatpush2.msra.mxu0 0.0
  %268 = vmatprep.subr.mxu0 0.0
  %269 = vmatpush2.msra.mxu0 0.0
  %270 = vmatprep.subr.mxu0 0.0
  %271 = vmatpush2.msra.mxu0 0.0
  %272 = vmatprep.subr.mxu0 0.0
  %273 = vmatpush2.msra.mxu0 0.0
  %274 = vmatprep.subr.mxu0 0.0
  %275 = vmatpush2.msra.mxu0 0.0
  %276 = vmatprep.subr.mxu0 0.0
  %277 = vmatpush2.msra.mxu0 0.0
  %278 = vmatprep.subr.mxu0 0.0
  %279 = vmatpush2.msra.mxu0 0.0
  %280 = vmatprep.subr.mxu0 0.0
  %281 = vmatpush2.msra.mxu0 0.0
  %282 = vmatprep.subr.mxu0 0.0
  %283 = vmatpush2.msra.mxu0 0.0
  %284 = vmatprep.subr.mxu0 0.0
  %285 = vmatpush2.msra.mxu0 0.0
  %286 = vmatprep.subr.mxu0 0.0
  %287 = vmatpush2.msra.mxu0 0.0
  %288 = vmatprep.subr.mxu0 0.0
  %289 = vmatpush2.msra.mxu0 0.0
  %290 = vmatprep.mubr.f32.mxu0 0.0
  %291 = vmatmul.mubr.f32.gmra.mxu0 %v146
  %v292 = vpop.f32.mrf.mxu0
  %v293 = vadd.f32 0.0, %v292
  %v294 = vpop.f32.mrf.mxu0
  %295 = vmatprep.mubr.f32.mxu0 0.0
  %296 = vmatmul.mubr.f32.gmra.mxu0 %v147
  %v297 = vpop.f32.mrf.mxu0
  %v298 = vadd.f32 0.0, %v297
  %v299 = vpop.f32.mrf.mxu0
  %300 = vmatprep.mubr.f32.mxu0 0.0
  %301 = vmatmul.mubr.f32.gmra.mxu0 %v148
  %v302 = vpop.f32.mrf.mxu0
  %v303 = vadd.f32 0.0, %v302
  %v304 = vpop.f32.mrf.mxu0
  %305 = vmatprep.mubr.f32.mxu0 0.0
  %306 = vmatmul.mubr.f32.gmra.mxu0 %v149
  %v307 = vpop.f32.mrf.mxu0
  %v308 = vadd.f32 0.0, %v307
  %v309 = vpop.f32.mrf.mxu0
  %310 = vmatprep.mubr.f32.mxu0 0.0
  %311 = vmatmul.mubr.f32.gmra.mxu0 %v150
  %v312 = vpop.f32.mrf.mxu0
  %v313 = vadd.f32 0.0, %v312
  %v314 = vpop.f32.mrf.mxu0
  %315 = vmatprep.mubr.f32.mxu0 0.0
  %316 = vmatmul.mubr.f32.gmra.mxu0 %v151
  %v317 = vpop.f32.mrf.mxu0
  %v318 = vadd.f32 0.0, %v317
  %v319 = vpop.f32.mrf.mxu0
  %320 = vmatprep.mubr.f32.mxu0 0.0
  %321 = vmatmul.mubr.f32.gmra.mxu0 %v152
  %v322 = vpop.f32.mrf.mxu0
  %v323 = vadd.f32 0.0, %v322
  %v324 = vpop.f32.mrf.mxu0
  %325 = vmatprep.mubr.f32.mxu0 0.0
  %326 = vmatmul.mubr.f32.gmra.mxu0 %v153
  %v327 = vpop.f32.mrf.mxu0
  %v328 = vadd.f32 0.0, %v327
  %v329 = vpop.f32.mrf.mxu0
  %330 = vmatprep.mubr.f32.mxu0 0.0
  %331 = vmatmul.mubr.f32.gmra.mxu0 %v154
  %v332 = vpop.f32.mrf.mxu0
  %v333 = vadd.f32 0.0, %v332
  %v334 = vpop.f32.mrf.mxu0
  %335 = vmatprep.mubr.f32.mxu0 0.0
  %336 = vmatmul.mubr.f32.gmra.mxu0 %v155
  %v337 = vpop.f32.mrf.mxu0
  %v338 = vadd.f32 0.0, %v337
  %v339 = vpop.f32.mrf.mxu0
  %340 = vmatprep.mubr.f32.mxu0 0.0
  %341 = vmatmul.mubr.f32.gmra.mxu0 %v156
  %v342 = vpop.f32.mrf.mxu0
  %v343 = vadd.f32 0.0, %v342
  %v344 = vpop.f32.mrf.mxu0
  %345 = vmatprep.mubr.f32.mxu0 0.0
  %346 = vmatmul.mubr.f32.gmra.mxu0 %v157
  %v347 = vpop.f32.mrf.mxu0
  %v348 = vadd.f32 0.0, %v347
  %v349 = vpop.f32.mrf.mxu0
  %350 = vmatprep.mubr.f32.mxu0 0.0
  %351 = vmatmul.mubr.f32.gmra.mxu0 %v158
  %v352 = vpop.f32.mrf.mxu0
  %v353 = vadd.f32 0.0, %v352
  %v354 = vpop.f32.mrf.mxu0
  %355 = vmatprep.mubr.f32.mxu0 0.0
  %356 = vmatmul.mubr.f32.gmra.mxu0 %v159
  %v357 = vpop.f32.mrf.mxu0
  %v358 = vadd.f32 0.0, %v357
  %v359 = vpop.f32.mrf.mxu0
  %360 = vmatprep.mubr.f32.mxu0 0.0
  %361 = vmatmul.mubr.f32.gmra.mxu0 %v160
  %v362 = vpop.f32.mrf.mxu0
  %v363 = vadd.f32 0.0, %v362
  %v364 = vpop.f32.mrf.mxu0
  %365 = vmatprep.mubr.f32.mxu0 0.0
  %366 = vmatmul.mubr.f32.gmra.mxu0 %v161
  %v367 = vpop.f32.mrf.mxu0
  %v368 = vadd.f32 0.0, %v367
  %v369 = vpop.f32.mrf.mxu0
  %370 = vmatprep.mubr.f32.mxu0 0.0
  %371 = vmatmul.mubr.f32.gmra.mxu0 %v162
  %v372 = vpop.f32.mrf.mxu0
  %v373 = vadd.f32 0.0, %v372
  %v374 = vpop.f32.mrf.mxu0
  %375 = vmatprep.mubr.f32.mxu0 0.0
  %376 = vmatmul.mubr.f32.gmra.mxu0 %v163
  %v377 = vpop.f32.mrf.mxu0
  %v378 = vadd.f32 0.0, %v377
  %v379 = vpop.f32.mrf.mxu0
  %380 = vmatprep.mubr.f32.mxu0 0.0
  %381 = vmatmul.mubr.f32.gmra.mxu0 %v164
  %v382 = vpop.f32.mrf.mxu0
  %v383 = vadd.f32 0.0, %v382
  %v384 = vpop.f32.mrf.mxu0
  %385 = vmatprep.mubr.f32.mxu0 0.0
  %386 = vmatmul.mubr.f32.gmra.mxu0 %v165
  %v387 = vpop.f32.mrf.mxu0
  %v388 = vadd.f32 0.0, %v387
  %v389 = vpop.f32.mrf.mxu0
  %390 = vmatprep.mubr.f32.mxu0 0.0
  %391 = vmatmul.mubr.f32.gmra.mxu0 %v166
  %v392 = vpop.f32.mrf.mxu0
  %v393 = vadd.f32 0.0, %v392
  %v394 = vpop.f32.mrf.mxu0
  %395 = vmatprep.mubr.f32.mxu0 0.0
  %396 = vmatmul.mubr.f32.gmra.mxu0 %v167
  %v397 = vpop.f32.mrf.mxu0
  %v398 = vadd.f32 0.0, %v397
  %v399 = vpop.f32.mrf.mxu0
  %400 = vmatprep.mubr.f32.mxu0 0.0
  %401 = vmatmul.mubr.f32.gmra.mxu0 %v168
  %v402 = vpop.f32.mrf.mxu0
  %v403 = vadd.f32 0.0, %v402
  %v404 = vpop.f32.mrf.mxu0
  %405 = vmatprep.mubr.f32.mxu0 0.0
  %406 = vmatmul.mubr.f32.gmra.mxu0 %v169
  %v407 = vpop.f32.mrf.mxu0
  %v408 = vadd.f32 0.0, %v407
  %v409 = vpop.f32.mrf.mxu0
  %410 = vmatprep.mubr.f32.mxu0 0.0
  %411 = vmatmul.mubr.f32.gmra.mxu0 %v170
  %v412 = vpop.f32.mrf.mxu0
  %v413 = vadd.f32 0.0, %v412
  %v414 = vpop.f32.mrf.mxu0
  %415 = vmatprep.mubr.f32.mxu0 0.0
  %416 = vmatmul.mubr.f32.gmra.mxu0 %v171
  %v417 = vpop.f32.mrf.mxu0
  %v418 = vadd.f32 0.0, %v417
  %v419 = vpop.f32.mrf.mxu0
  %420 = vmatprep.mubr.f32.mxu0 0.0
  %421 = vmatmul.mubr.f32.gmra.mxu0 %v172
  %v422 = vpop.f32.mrf.mxu0
  %v423 = vadd.f32 0.0, %v422
  %v424 = vpop.f32.mrf.mxu0
  %425 = vmatprep.mubr.f32.mxu0 0.0
  %426 = vmatmul.mubr.f32.gmra.mxu0 %v173
  %v427 = vpop.f32.mrf.mxu0
  %v428 = vadd.f32 0.0, %v427
  %v429 = vpop.f32.mrf.mxu0
  %430 = vmatprep.mubr.f32.mxu0 0.0
  %431 = vmatmul.mubr.f32.gmra.mxu0 %v174
  %v432 = vpop.f32.mrf.mxu0
  %v433 = vadd.f32 0.0, %v432
  %v434 = vpop.f32.mrf.mxu0
  %435 = vmatprep.mubr.f32.mxu0 0.0
  %436 = vmatmul.mubr.f32.gmra.mxu0 %v175
  %v437 = vpop.f32.mrf.mxu0
  %v438 = vadd.f32 0.0, %v437
  %v439 = vpop.f32.mrf.mxu0
  %440 = vmatprep.mubr.f32.mxu0 0.0
  %441 = vmatmul.mubr.f32.gmra.mxu0 %v176
  %v442 = vpop.f32.mrf.mxu0
  %v443 = vadd.f32 0.0, %v442
  %v444 = vpop.f32.mrf.mxu0
  %445 = vmatprep.mubr.f32.mxu0 0.0
  %446 = vmatmul.mubr.f32.gmra.mxu0 %v177
  %v447 = vpop.f32.mrf.mxu0
  %v448 = vadd.f32 0.0, %v447
  %v449 = vpop.f32.mrf.mxu0
  %450 = vmatprep.mubr.f32.mxu0 0.0
  %451 = vmatmul.mubr.f32.gmra.mxu0 %v178
  %v452 = vpop.f32.mrf.mxu0
  %v453 = vadd.f32 0.0, %v452
  %v454 = vpop.f32.mrf.mxu0
  %455 = vmatprep.mubr.f32.mxu0 0.0
  %456 = vmatmul.mubr.f32.gmra.mxu0 %v179
  %v457 = vpop.f32.mrf.mxu0
  %v458 = vadd.f32 0.0, %v457
  %v459 = vpop.f32.mrf.mxu0
  %460 = vmatprep.mubr.f32.mxu0 0.0
  %461 = vmatmul.mubr.f32.gmra.mxu0 %v180
  %v462 = vpop.f32.mrf.mxu0
  %v463 = vadd.f32 0.0, %v462
  %v464 = vpop.f32.mrf.mxu0
  %465 = vmatprep.mubr.f32.mxu0 0.0
  %466 = vmatmul.mubr.f32.gmra.mxu0 %v181
  %v467 = vpop.f32.mrf.mxu0
  %v468 = vadd.f32 0.0, %v467
  %v469 = vpop.f32.mrf.mxu0
  %470 = vmatprep.mubr.f32.mxu0 0.0
  %471 = vmatmul.mubr.f32.gmra.mxu0 %v182
  %v472 = vpop.f32.mrf.mxu0
  %v473 = vadd.f32 0.0, %v472
  %v474 = vpop.f32.mrf.mxu0
  %475 = vmatprep.mubr.f32.mxu0 0.0
  %476 = vmatmul.mubr.f32.gmra.mxu0 %v183
  %v477 = vpop.f32.mrf.mxu0
  %v478 = vadd.f32 0.0, %v477
  %v479 = vpop.f32.mrf.mxu0
  %480 = vmatprep.mubr.f32.mxu0 0.0
  %481 = vmatmul.mubr.f32.gmra.mxu0 %v184
  %v482 = vpop.f32.mrf.mxu0
  %v483 = vadd.f32 0.0, %v482
  %v484 = vpop.f32.mrf.mxu0
  %485 = vmatprep.mubr.f32.mxu0 0.0
  %486 = vmatmul.mubr.f32.gmra.mxu0 %v185
  %v487 = vpop.f32.mrf.mxu0
  %v488 = vadd.f32 0.0, %v487
  %v489 = vpop.f32.mrf.mxu0
  %490 = vmatprep.mubr.f32.mxu0 0.0
  %491 = vmatmul.mubr.f32.gmra.mxu0 %v186
  %v492 = vpop.f32.mrf.mxu0
  %v493 = vadd.f32 0.0, %v492
  %v494 = vpop.f32.mrf.mxu0
  %495 = vmatprep.mubr.f32.mxu0 0.0
  %496 = vmatmul.mubr.f32.gmra.mxu0 %v187
  %v497 = vpop.f32.mrf.mxu0
  %v498 = vadd.f32 0.0, %v497
  %v499 = vpop.f32.mrf.mxu0
  %500 = vmatprep.mubr.f32.mxu0 0.0
  %501 = vmatmul.mubr.f32.gmra.mxu0 %v188
  %v502 = vpop.f32.mrf.mxu0
  %v503 = vadd.f32 0.0, %v502
  %v504 = vpop.f32.mrf.mxu0
  %505 = vmatprep.mubr.f32.mxu0 0.0
  %506 = vmatmul.mubr.f32.gmra.mxu0 %v189
  %v507 = vpop.f32.mrf.mxu0
  %v508 = vadd.f32 0.0, %v507
  %v509 = vpop.f32.mrf.mxu0
  %510 = vmatprep.mubr.f32.mxu0 0.0
  %511 = vmatmul.mubr.f32.gmra.mxu0 %v190
  %v512 = vpop.f32.mrf.mxu0
  %v513 = vadd.f32 0.0, %v512
  %v514 = vpop.f32.mrf.mxu0
  %515 = vmatprep.mubr.f32.mxu0 0.0
  %516 = vmatmul.mubr.f32.gmra.mxu0 %v191
  %v517 = vpop.f32.mrf.mxu0
  %v518 = vadd.f32 0.0, %v517
  %v519 = vpop.f32.mrf.mxu0
  %520 = vmatprep.mubr.f32.mxu0 0.0
  %521 = vmatmul.mubr.f32.gmra.mxu0 %v192
  %v522 = vpop.f32.mrf.mxu0
  %v523 = vadd.f32 0.0, %v522
  %v524 = vpop.f32.mrf.mxu0
  %525 = vmatprep.mubr.f32.mxu0 0.0
  %526 = vmatmul.mubr.f32.gmra.mxu0 %v193
  %v527 = vpop.f32.mrf.mxu0
  %v528 = vadd.f32 0.0, %v527
  %v529 = vpop.f32.mrf.mxu0
  %530 = vmatprep.mubr.f32.mxu0 0.0
  %531 = vmatmul.mubr.f32.gmra.mxu0 %v194
  %v532 = vpop.f32.mrf.mxu0
  %v533 = vadd.f32 0.0, %v532
  %v534 = vpop.f32.mrf.mxu0
  %535 = vmatprep.mubr.f32.mxu0 0.0
  %536 = vmatmul.mubr.f32.gmra.mxu0 %v195
  %v537 = vpop.f32.mrf.mxu0
  %v538 = vadd.f32 0.0, %v537
  %v539 = vpop.f32.mrf.mxu0
  %540 = vmatprep.mubr.f32.mxu0 0.0
  %541 = vmatmul.mubr.f32.gmra.mxu0 %v196
  %v542 = vpop.f32.mrf.mxu0
  %v543 = vadd.f32 0.0, %v542
  %v544 = vpop.f32.mrf.mxu0
  %545 = vmatprep.mubr.f32.mxu0 0.0
  %546 = vmatmul.mubr.f32.gmra.mxu0 %v197
  %v547 = vpop.f32.mrf.mxu0
  %v548 = vadd.f32 0.0, %v547
  %v549 = vpop.f32.mrf.mxu0
  %550 = vmatprep.mubr.f32.mxu0 0.0
  %551 = vmatmul.mubr.f32.gmra.mxu0 %v198
  %v552 = vpop.f32.mrf.mxu0
  %v553 = vadd.f32 0.0, %v552
  %v554 = vpop.f32.mrf.mxu0
  %555 = vmatprep.mubr.f32.mxu0 0.0
  %556 = vmatmul.mubr.f32.gmra.mxu0 %v199
  %v557 = vpop.f32.mrf.mxu0
  %v558 = vadd.f32 0.0, %v557
  %v559 = vpop.f32.mrf.mxu0
  %560 = vmatprep.mubr.f32.mxu0 0.0
  %561 = vmatmul.mubr.f32.gmra.mxu0 %v200
  %v562 = vpop.f32.mrf.mxu0
  %v563 = vadd.f32 0.0, %v562
  %v564 = vpop.f32.mrf.mxu0
  %565 = vmatprep.mubr.f32.mxu0 0.0
  %566 = vmatmul.mubr.f32.gmra.mxu0 %v201
  %v567 = vpop.f32.mrf.mxu0
  %v568 = vadd.f32 0.0, %v567
  %v569 = vpop.f32.mrf.mxu0
  %570 = vmatprep.mubr.f32.mxu0 0.0
  %571 = vmatmul.mubr.f32.gmra.mxu0 %v202
  %v572 = vpop.f32.mrf.mxu0
  %v573 = vadd.f32 0.0, %v572
  %v574 = vpop.f32.mrf.mxu0
  %575 = vmatprep.mubr.f32.mxu0 0.0
  %576 = vmatmul.mubr.f32.gmra.mxu0 %v203
  %v577 = vpop.f32.mrf.mxu0
  %v578 = vadd.f32 0.0, %v577
  %v579 = vpop.f32.mrf.mxu0
  %580 = vmatprep.mubr.f32.mxu0 0.0
  %581 = vmatmul.mubr.f32.gmra.mxu0 %v204
  %v582 = vpop.f32.mrf.mxu0
  %v583 = vadd.f32 0.0, %v582
  %v584 = vpop.f32.mrf.mxu0
  %585 = vmatprep.mubr.f32.mxu0 0.0
  %586 = vmatmul.mubr.f32.gmra.mxu0 %v205
  %v587 = vpop.f32.mrf.mxu0
  %v588 = vadd.f32 0.0, %v587
  %v589 = vpop.f32.mrf.mxu0
  %590 = vmatprep.mubr.f32.mxu0 0.0
  %591 = vmatmul.mubr.f32.gmra.mxu0 %v206
  %v592 = vpop.f32.mrf.mxu0
  %v593 = vadd.f32 0.0, %v592
  %v594 = vpop.f32.mrf.mxu0
  %595 = vmatprep.mubr.f32.mxu0 0.0
  %596 = vmatmul.mubr.f32.gmra.mxu0 %v207
  %v597 = vpop.f32.mrf.mxu0
  %v598 = vadd.f32 0.0, %v597
  %v599 = vpop.f32.mrf.mxu0
  %600 = vmatprep.mubr.f32.mxu0 0.0
  %601 = vmatmul.mubr.f32.gmra.mxu0 %v208
  %v602 = vpop.f32.mrf.mxu0
  %v603 = vadd.f32 0.0, %v602
  %v604 = vpop.f32.mrf.mxu0
  %605 = vmatprep.mubr.f32.mxu0 0.0
  %606 = vmatmul.mubr.f32.gmra.mxu0 %v209
  %v607 = vpop.f32.mrf.mxu0
  %v608 = vadd.f32 0.0, %v607
  %v609 = vpop.f32.mrf.mxu0
  %610 = vdwg.mxu0
  %v611 = vadd.f32 %v82, %v293
  %v612 = vadd.f32 %v83, %v298
  %v613 = vadd.f32 %v84, %v303
  %v614 = vadd.f32 %v85, %v308
  %v615 = vadd.f32 %v86, %v313
  %v616 = vadd.f32 %v87, %v318
  %v617 = vadd.f32 %v88, %v323
  %v618 = vadd.f32 %v89, %v328
  %v619 = vadd.f32 %v90, %v333
  %v620 = vadd.f32 %v91, %v338
  %v621 = vadd.f32 %v92, %v343
  %v622 = vadd.f32 %v93, %v348
  %v623 = vadd.f32 %v94, %v353
  %v624 = vadd.f32 %v95, %v358
  %v625 = vadd.f32 %v96, %v363
  %v626 = vadd.f32 %v97, %v368
  %v627 = vadd.f32 %v98, %v373
  %v628 = vadd.f32 %v99, %v378
  %v629 = vadd.f32 %v100, %v383
  %v630 = vadd.f32 %v101, %v388
  %v631 = vadd.f32 %v102, %v393
  %v632 = vadd.f32 %v103, %v398
  %v633 = vadd.f32 %v104, %v403
  %v634 = vadd.f32 %v105, %v408
  %v635 = vadd.f32 %v106, %v413
  %v636 = vadd.f32 %v107, %v418
  %v637 = vadd.f32 %v108, %v423
  %v638 = vadd.f32 %v109, %v428
  %v639 = vadd.f32 %v110, %v433
  %v640 = vadd.f32 %v111, %v438
  %v641 = vadd.f32 %v112, %v443
  %v642 = vadd.f32 %v113, %v448
  %v643 = vadd.f32 %v114, %v453
  %v644 = vadd.f32 %v115, %v458
  %v645 = vadd.f32 %v116, %v463
  %v646 = vadd.f32 %v117, %v468
  %v647 = vadd.f32 %v118, %v473
  %v648 = vadd.f32 %v119, %v478
  %v649 = vadd.f32 %v120, %v483
  %v650 = vadd.f32 %v121, %v488
  %v651 = vadd.f32 %v122, %v493
  %v652 = vadd.f32 %v123, %v498
  %v653 = vadd.f32 %v124, %v503
  %v654 = vadd.f32 %v125, %v508
  %v655 = vadd.f32 %v126, %v513
  %v656 = vadd.f32 %v127, %v518
  %v657 = vadd.f32 %v128, %v523
  %v658 = vadd.f32 %v129, %v528
  %v659 = vadd.f32 %v130, %v533
  %v660 = vadd.f32 %v131, %v538
  %v661 = vadd.f32 %v132, %v543
  %v662 = vadd.f32 %v133, %v548
  %v663 = vadd.f32 %v134, %v553
  %v664 = vadd.f32 %v135, %v558
  %v665 = vadd.f32 %v136, %v563
  %v666 = vadd.f32 %v137, %v568
  %v667 = vadd.f32 %v138, %v573
  %v668 = vadd.f32 %v139, %v578
  %v669 = vadd.f32 %v140, %v583
  %v670 = vadd.f32 %v141, %v588
  %v671 = vadd.f32 %v142, %v593
  %v672 = vadd.f32 %v143, %v598
  %v673 = vadd.f32 %v144, %v603
  %v674 = vadd.f32 %v145, %v608
  %675 = vst [vmem:[#allocation2] sm:$0xff] %v611
  %676 = vst [vmem:[#allocation2 + $0x8] sm:$0xff] %v612
  %677 = vst [vmem:[#allocation2 + $0x10] sm:$0xff] %v613
  %678 = vst [vmem:[#allocation2 + $0x18] sm:$0xff] %v614
  %679 = vst [vmem:[#allocation2 + $0x20] sm:$0xff] %v615
  %680 = vst [vmem:[#allocation2 + $0x28] sm:$0xff] %v616
  %681 = vst [vmem:[#allocation2 + $0x30] sm:$0xff] %v617
  %682 = vst [vmem:[#allocation2 + $0x38] sm:$0xff] %v618
  %683 = vst [vmem:[#allocation2 + $0x40] sm:$0xff] %v619
  %684 = vst [vmem:[#allocation2 + $0x48] sm:$0xff] %v620
  %685 = vst [vmem:[#allocation2 + $0x50] sm:$0xff] %v621
  %686 = vst [vmem:[#allocation2 + $0x58] sm:$0xff] %v622
  %687 = vst [vmem:[#allocation2 + $0x60] sm:$0xff] %v623
  %688 = vst [vmem:[#allocation2 + $0x68] sm:$0xff] %v624
  %689 = vst [vmem:[#allocation2 + $0x70] sm:$0xff] %v625
  %690 = vst [vmem:[#allocation2 + $0x78] sm:$0xff] %v626
  %691 = vst [vmem:[#allocation2 + $0x80] sm:$0xff] %v627
  %692 = vst [vmem:[#allocation2 + $0x88] sm:$0xff] %v628
  %693 = vst [vmem:[#allocation2 + $0x90] sm:$0xff] %v629
  %694 = vst [vmem:[#allocation2 + $0x98] sm:$0xff] %v630
  %695 = vst [vmem:[#allocation2 + $0xa0] sm:$0xff] %v631
  %696 = vst [vmem:[#allocation2 + $0xa8] sm:$0xff] %v632
  %697 = vst [vmem:[#allocation2 + $0xb0] sm:$0xff] %v633
  %698 = vst [vmem:[#allocation2 + $0xb8] sm:$0xff] %v634
  %699 = vst [vmem:[#allocation2 + $0xc0] sm:$0xff] %v635
  %700 = vst [vmem:[#allocation2 + $0xc8] sm:$0xff] %v636
  %701 = vst [vmem:[#allocation2 + $0xd0] sm:$0xff] %v637
  %702 = vst [vmem:[#allocation2 + $0xd8] sm:$0xff] %v638
  %703 = vst [vmem:[#allocation2 + $0xe0] sm:$0xff] %v639
  %704 = vst [vmem:[#allocation2 + $0xe8] sm:$0xff] %v640
  %705 = vst [vmem:[#allocation2 + $0xf0] sm:$0xff] %v641
  %706 = vst [vmem:[#allocation2 + $0xf8] sm:$0xff] %v642
  %707 = vst [vmem:[#allocation2 + $0x100] sm:$0xff] %v643
  %708 = vst [vmem:[#allocation2 + $0x108] sm:$0xff] %v644
  %709 = vst [vmem:[#allocation2 + $0x110] sm:$0xff] %v645
  %710 = vst [vmem:[#allocation2 + $0x118] sm:$0xff] %v646
  %711 = vst [vmem:[#allocation2 + $0x120] sm:$0xff] %v647
  %712 = vst [vmem:[#allocation2 + $0x128] sm:$0xff] %v648
  %713 = vst [vmem:[#allocation2 + $0x130] sm:$0xff] %v649
  %714 = vst [vmem:[#allocation2 + $0x138] sm:$0xff] %v650
  %715 = vst [vmem:[#allocation2 + $0x140] sm:$0xff] %v651
  %716 = vst [vmem:[#allocation2 + $0x148] sm:$0xff] %v652
  %717 = vst [vmem:[#allocation2 + $0x150] sm:$0xff] %v653
  %718 = vst [vmem:[#allocation2 + $0x158] sm:$0xff] %v654
  %719 = vst [vmem:[#allocation2 + $0x160] sm:$0xff] %v655
  %720 = vst [vmem:[#allocation2 + $0x168] sm:$0xff] %v656
  %721 = vst [vmem:[#allocation2 + $0x170] sm:$0xff] %v657
  %722 = vst [vmem:[#allocation2 + $0x178] sm:$0xff] %v658
  %723 = vst [vmem:[#allocation2 + $0x180] sm:$0xff] %v659
  %724 = vst [vmem:[#allocation2 + $0x188] sm:$0xff] %v660
  %725 = vst [vmem:[#allocation2 + $0x190] sm:$0xff] %v661
  %726 = vst [vmem:[#allocation2 + $0x198] sm:$0xff] %v662
  %727 = vst [vmem:[#allocation2 + $0x1a0] sm:$0xff] %v663
  %728 = vst [vmem:[#allocation2 + $0x1a8] sm:$0xff] %v664
  %729 = vst [vmem:[#allocation2 + $0x1b0] sm:$0xff] %v665
  %730 = vst [vmem:[#allocation2 + $0x1b8] sm:$0xff] %v666
  %731 = vst [vmem:[#allocation2 + $0x1c0] sm:$0xff] %v667
  %732 = vst [vmem:[#allocation2 + $0x1c8] sm:$0xff] %v668
  %733 = vst [vmem:[#allocation2 + $0x1d0] sm:$0xff] %v669
  %734 = vst [vmem:[#allocation2 + $0x1d8] sm:$0xff] %v670
  %735 = vst [vmem:[#allocation2 + $0x1e0] sm:$0xff] %v671
  %736 = vst [vmem:[#allocation2 + $0x1e8] sm:$0xff] %v672
  %737 = vst [vmem:[#allocation2 + $0x1f0] sm:$0xff] %v673
  %738 = vst [vmem:[#allocation2 + $0x1f8] sm:$0xff] %v674
  // Predicated region
  $region18: #{lora_conv2d_forward.1} parent=0 // pred_check
    %p739 = pneg %p14
  $region19: #{lora_conv2d_forward.1} parent=0 // pred_check_branch
    %741 = sbr.rel (%p739) target = $region21
  $region20: #{lora_conv2d_forward.1} parent=0 // pred_region
    %v742 = vld [vmem:[#allocation2] sm:$0xff]
    %v743 = vld [vmem:[#allocation2 + $0x8] sm:$0xff]
    %v744 = vld [vmem:[#allocation2 + $0x10] sm:$0xff]
    %v745 = vld [vmem:[#allocation2 + $0x18] sm:$0xff]
    %v746 = vld [vmem:[#allocation2 + $0x20] sm:$0xff]
    %v747 = vld [vmem:[#allocation2 + $0x28] sm:$0xff]
    %v748 = vld [vmem:[#allocation2 + $0x30] sm:$0xff]
    %v749 = vld [vmem:[#allocation2 + $0x38] sm:$0xff]
    %v750 = vld [vmem:[#allocation2 + $0x40] sm:$0xff]
    %v751 = vld [vmem:[#allocation2 + $0x48] sm:$0xff]
    %v752 = vld [vmem:[#allocation2 + $0x50] sm:$0xff]
    %v753 = vld [vmem:[#allocation2 + $0x58] sm:$0xff]
    %v754 = vld [vmem:[#allocation2 + $0x60] sm:$0xff]
    %v755 = vld [vmem:[#allocation2 + $0x68] sm:$0xff]
    %v756 = vld [vmem:[#allocation2 + $0x70] sm:$0xff]
    %v757 = vld [vmem:[#allocation2 + $0x78] sm:$0xff]
    %v758 = vld [vmem:[#allocation2 + $0x80] sm:$0xff]
    %v759 = vld [vmem:[#allocation2 + $0x88] sm:$0xff]
    %v760 = vld [vmem:[#allocation2 + $0x90] sm:$0xff]
    %v761 = vld [vmem:[#allocation2 + $0x98] sm:$0xff]
    %v762 = vld [vmem:[#allocation2 + $0xa0] sm:$0xff]
    %v763 = vld [vmem:[#allocation2 + $0xa8] sm:$0xff]
    %v764 = vld [vmem:[#allocation2 + $0xb0] sm:$0xff]
    %v765 = vld [vmem:[#allocation2 + $0xb8] sm:$0xff]
    %v766 = vld [vmem:[#allocation2 + $0xc0] sm:$0xff]
    %v767 = vld [vmem:[#allocation2 + $0xc8] sm:$0xff]
    %v768 = vld [vmem:[#allocation2 + $0xd0] sm:$0xff]
    %v769 = vld [vmem:[#allocation2 + $0xd8] sm:$0xff]
    %v770 = vld [vmem:[#allocation2 + $0xe0] sm:$0xff]
    %v771 = vld [vmem:[#allocation2 + $0xe8] sm:$0xff]
    %v772 = vld [vmem:[#allocation2 + $0xf0] sm:$0xff]
    %v773 = vld [vmem:[#allocation2 + $0xf8] sm:$0xff]
    %v774 = vld [vmem:[#allocation2 + $0x100] sm:$0xff]
    %v775 = vld [vmem:[#allocation2 + $0x108] sm:$0xff]
    %v776 = vld [vmem:[#allocation2 + $0x110] sm:$0xff]
    %v777 = vld [vmem:[#allocation2 + $0x118] sm:$0xff]
    %v778 = vld [vmem:[#allocation2 + $0x120] sm:$0xff]
    %v779 = vld [vmem:[#allocation2 + $0x128] sm:$0xff]
    %v780 = vld [vmem:[#allocation2 + $0x130] sm:$0xff]
    %v781 = vld [vmem:[#allocation2 + $0x138] sm:$0xff]
    %v782 = vld [vmem:[#allocation2 + $0x140] sm:$0xff]
    %v783 = vld [vmem:[#allocation2 + $0x148] sm:$0xff]
    %v784 = vld [vmem:[#allocation2 + $0x150] sm:$0xff]
    %v785 = vld [vmem:[#allocation2 + $0x158] sm:$0xff]
    %v786 = vld [vmem:[#allocation2 + $0x160] sm:$0xff]
    %v787 = vld [vmem:[#allocation2 + $0x168] sm:$0xff]
    %v788 = vld [vmem:[#allocation2 + $0x170] sm:$0xff]
    %v789 = vld [vmem:[#allocation2 + $0x178] sm:$0xff]
    %v790 = vld [vmem:[#allocation2 + $0x180] sm:$0xff]
    %v791 = vld [vmem:[#allocation2 + $0x188] sm:$0xff]
    %v792 = vld [vmem:[#allocation2 + $0x190] sm:$0xff]
    %v793 = vld [vmem:[#allocation2 + $0x198] sm:$0xff]
    %v794 = vld [vmem:[#allocation2 + $0x1a0] sm:$0xff]
    %v795 = vld [vmem:[#allocation2 + $0x1a8] sm:$0xff]
    %v796 = vld [vmem:[#allocation2 + $0x1b0] sm:$0xff]
    %v797 = vld [vmem:[#allocation2 + $0x1b8] sm:$0xff]
    %v798 = vld [vmem:[#allocation2 + $0x1c0] sm:$0xff]
    %v799 = vld [vmem:[#allocation2 + $0x1c8] sm:$0xff]
    %v800 = vld [vmem:[#allocation2 + $0x1d0] sm:$0xff]
    %v801 = vld [vmem:[#allocation2 + $0x1d8] sm:$0xff]
    %v802 = vld [vmem:[#allocation2 + $0x1e0] sm:$0xff]
    %v803 = vld [vmem:[#allocation2 + $0x1e8] sm:$0xff]
    %v804 = vld [vmem:[#allocation2 + $0x1f0] sm:$0xff]
    %v805 = vld [vmem:[#allocation2 + $0x1f8] sm:$0xff]
    %v806 = vld [vmem:[%s2] sm:$0x1]
    %v808 = vlaneseq
    %v809 = vshrl.u32 %v808, 7
    %v810 = vsub.s32 0, %v809
    %v811 = vrot.slane %v806, %v810
    %v813 = vadd.f32 %v742, %v811
    %v814 = vadd.f32 %v743, %v811
    %v815 = vadd.f32 %v744, %v811
    %v816 = vadd.f32 %v745, %v811
    %v817 = vadd.f32 %v746, %v811
    %v818 = vadd.f32 %v747, %v811
    %v819 = vadd.f32 %v748, %v811
    %v820 = vadd.f32 %v749, %v811
    %v821 = vadd.f32 %v750, %v811
    %v822 = vadd.f32 %v751, %v811
    %v823 = vadd.f32 %v752, %v811
    %v824 = vadd.f32 %v753, %v811
    %v825 = vadd.f32 %v754, %v811
    %v826 = vadd.f32 %v755, %v811
    %v827 = vadd.f32 %v756, %v811
    %v828 = vadd.f32 %v757, %v811
    %v829 = vadd.f32 %v758, %v811
    %v830 = vadd.f32 %v759, %v811
    %v831 = vadd.f32 %v760, %v811
    %v832 = vadd.f32 %v761, %v811
    %v833 = vadd.f32 %v762, %v811
    %v834 = vadd.f32 %v763, %v811
    %v835 = vadd.f32 %v764, %v811
    %v836 = vadd.f32 %v765, %v811
    %v837 = vadd.f32 %v766, %v811
    %v838 = vadd.f32 %v767, %v811
    %v839 = vadd.f32 %v768, %v811
    %v840 = vadd.f32 %v769, %v811
    %v841 = vadd.f32 %v770, %v811
    %v842 = vadd.f32 %v771, %v811
    %v843 = vadd.f32 %v772, %v811
    %v844 = vadd.f32 %v773, %v811
    %v845 = vadd.f32 %v774, %v811
    %v846 = vadd.f32 %v775, %v811
    %v847 = vadd.f32 %v776, %v811
    %v848 = vadd.f32 %v777, %v811
    %v849 = vadd.f32 %v778, %v811
    %v850 = vadd.f32 %v779, %v811
    %v851 = vadd.f32 %v780, %v811
    %v852 = vadd.f32 %v781, %v811
    %v853 = vadd.f32 %v782, %v811
    %v854 = vadd.f32 %v783, %v811
    %v855 = vadd.f32 %v784, %v811
    %v856 = vadd.f32 %v785, %v811
    %v857 = vadd.f32 %v786, %v811
    %v858 = vadd.f32 %v787, %v811
    %v859 = vadd.f32 %v788, %v811
    %v860 = vadd.f32 %v789, %v811
    %v861 = vadd.f32 %v790, %v811
    %v862 = vadd.f32 %v791, %v811
    %v863 = vadd.f32 %v792, %v811
    %v864 = vadd.f32 %v793, %v811
    %v865 = vadd.f32 %v794, %v811
    %v866 = vadd.f32 %v795, %v811
    %v867 = vadd.f32 %v796, %v811
    %v868 = vadd.f32 %v797, %v811
    %v869 = vadd.f32 %v798, %v811
    %v870 = vadd.f32 %v799, %v811
    %v871 = vadd.f32 %v800, %v811
    %v872 = vadd.f32 %v801, %v811
    %v873 = vadd.f32 %v802, %v811
    %v874 = vadd.f32 %v803, %v811
    %v875 = vadd.f32 %v804, %v811
    %v876 = vadd.f32 %v805, %v811
    %877 = vst [vmem:[%s3] sm:$0xff] %v813
    %878 = vst [vmem:[%s3 + $0x8] sm:$0xff] %v814
    %879 = vst [vmem:[%s3 + $0x10] sm:$0xff] %v815
    %880 = vst [vmem:[%s3 + $0x18] sm:$0xff] %v816
    %881 = vst [vmem:[%s3 + $0x20] sm:$0xff] %v817
    %882 = vst [vmem:[%s3 + $0x28] sm:$0xff] %v818
    %883 = vst [vmem:[%s3 + $0x30] sm:$0xff] %v819
    %884 = vst [vmem:[%s3 + $0x38] sm:$0xff] %v820
    %885 = vst [vmem:[%s3 + $0x40] sm:$0xff] %v821
    %886 = vst [vmem:[%s3 + $0x48] sm:$0xff] %v822
    %887 = vst [vmem:[%s3 + $0x50] sm:$0xff] %v823
    %888 = vst [vmem:[%s3 + $0x58] sm:$0xff] %v824
    %889 = vst [vmem:[%s3 + $0x60] sm:$0xff] %v825
    %890 = vst [vmem:[%s3 + $0x68] sm:$0xff] %v826
    %891 = vst [vmem:[%s3 + $0x70] sm:$0xff] %v827
    %892 = vst [vmem:[%s3 + $0x78] sm:$0xff] %v828
    %893 = vst [vmem:[%s3 + $0x80] sm:$0xff] %v829
    %894 = vst [vmem:[%s3 + $0x88] sm:$0xff] %v830
    %895 = vst [vmem:[%s3 + $0x90] sm:$0xff] %v831
    %896 = vst [vmem:[%s3 + $0x98] sm:$0xff] %v832
    %897 = vst [vmem:[%s3 + $0xa0] sm:$0xff] %v833
    %898 = vst [vmem:[%s3 + $0xa8] sm:$0xff] %v834
    %899 = vst [vmem:[%s3 + $0xb0] sm:$0xff] %v835
    %900 = vst [vmem:[%s3 + $0xb8] sm:$0xff] %v836
    %901 = vst [vmem:[%s3 + $0xc0] sm:$0xff] %v837
    %902 = vst [vmem:[%s3 + $0xc8] sm:$0xff] %v838
    %903 = vst [vmem:[%s3 + $0xd0] sm:$0xff] %v839
    %904 = vst [vmem:[%s3 + $0xd8] sm:$0xff] %v840
    %905 = vst [vmem:[%s3 + $0xe0] sm:$0xff] %v841
    %906 = vst [vmem:[%s3 + $0xe8] sm:$0xff] %v842
    %907 = vst [vmem:[%s3 + $0xf0] sm:$0xff] %v843
    %908 = vst [vmem:[%s3 + $0xf8] sm:$0xff] %v844
    %909 = vst [vmem:[%s3 + $0x100] sm:$0xff] %v845
    %910 = vst [vmem:[%s3 + $0x108] sm:$0xff] %v846
    %911 = vst [vmem:[%s3 + $0x110] sm:$0xff] %v847
    %912 = vst [vmem:[%s3 + $0x118] sm:$0xff] %v848
    %913 = vst [vmem:[%s3 + $0x120] sm:$0xff] %v849
    %914 = vst [vmem:[%s3 + $0x128] sm:$0xff] %v850
    %915 = vst [vmem:[%s3 + $0x130] sm:$0xff] %v851
    %916 = vst [vmem:[%s3 + $0x138] sm:$0xff] %v852
    %917 = vst [vmem:[%s3 + $0x140] sm:$0xff] %v853
    %918 = vst [vmem:[%s3 + $0x148] sm:$0xff] %v854
    %919 = vst [vmem:[%s3 + $0x150] sm:$0xff] %v855
    %920 = vst [vmem:[%s3 + $0x158] sm:$0xff] %v856
    %921 = vst [vmem:[%s3 + $0x160] sm:$0xff] %v857
    %922 = vst [vmem:[%s3 + $0x168] sm:$0xff] %v858
    %923 = vst [vmem:[%s3 + $0x170] sm:$0xff] %v859
    %924 = vst [vmem:[%s3 + $0x178] sm:$0xff] %v860
    %925 = vst [vmem:[%s3 + $0x180] sm:$0xff] %v861
    %926 = vst [vmem:[%s3 + $0x188] sm:$0xff] %v862
    %927 = vst [vmem:[%s3 + $0x190] sm:$0xff] %v863
    %928 = vst [vmem:[%s3 + $0x198] sm:$0xff] %v864
    %929 = vst [vmem:[%s3 + $0x1a0] sm:$0xff] %v865
    %930 = vst [vmem:[%s3 + $0x1a8] sm:$0xff] %v866
    %931 = vst [vmem:[%s3 + $0x1b0] sm:$0xff] %v867
    %932 = vst [vmem:[%s3 + $0x1b8] sm:$0xff] %v868
    %933 = vst [vmem:[%s3 + $0x1c0] sm:$0xff] %v869
    %934 = vst [vmem:[%s3 + $0x1c8] sm:$0xff] %v870
    %935 = vst [vmem:[%s3 + $0x1d0] sm:$0xff] %v871
    %936 = vst [vmem:[%s3 + $0x1d8] sm:$0xff] %v872
    %937 = vst [vmem:[%s3 + $0x1e0] sm:$0xff] %v873
    %938 = vst [vmem:[%s3 + $0x1e8] sm:$0xff] %v874
    %939 = vst [vmem:[%s3 + $0x1f0] sm:$0xff] %v875
    %940 = vst [vmem:[%s3 + $0x1f8] sm:$0xff] %v876
  $region21: #{lora_conv2d_forward.1} parent=0 // pred_fallthru
    _
  // Predicated region
  $region22: #{lora_conv2d_forward.1} parent=0 // pred_check
    _
  $region23: #{lora_conv2d_forward.1} parent=0 // pred_check_branch
    %942 = sbr.rel (0) target = $region25
  $region24: #{lora_conv2d_forward.1} parent=0 // pred_region
    _
  $region25: #{lora_conv2d_forward.1} parent=0 // pred_fallthru
    _
  // Predicated region
  $region26: #{lora_conv2d_forward.1} parent=0 // pred_check
    _
  $region27: #{lora_conv2d_forward.1} parent=0 // pred_check_branch
    %944 = sbr.rel (0) target = $region29
  $region28: #{lora_conv2d_forward.1} parent=0 // pred_region
    _
  $region29: #{lora_conv2d_forward.1} parent=0 // pred_fallthru
    _

</llo_original>
